<compile_context>
chip_gen: v7x
topology: tpu7x:2x2x1
jax: 0.10.0
libtpu: 0.0.40
codegen_flags: <defaults>
</compile_context>

<pallas_src>
import functools

import jax
import jax.numpy as jnp
from jax.experimental import pallas as pl
from jax.experimental.pallas import tpu as pltpu

_LANE = 128      # lane width  (last-dim alignment)
_SUBLANE = 8     # sublane width (second-to-last-dim alignment)


def _round_up(x, m):
    return ((x + m - 1) // m) * m


def _pad2d(m, rows, cols):
    return jnp.pad(m, ((0, rows - m.shape[0]), (0, cols - m.shape[1])))


def _vmem_capacity():
    try:
        return int(pltpu.get_tpu_info().vmem_capacity_bytes)
    except Exception:
        return 64 << 20          # conservative default: v7x per-TensorCore VMEM


def _vmem_limit(vmem_cap):
    return max(32 << 20, int(0.85 * vmem_cap))


def _augment(h, rows_p, f_p):
    """Pad h to (rows_p, f_p + 128) bf16 with a ones-column at column f_p.

    Using this as the aggregation RHS makes the same A @ H matmul also emit the
    in-degree of every destination row (at output column f_p) for free.
    """
    r, f = h.shape
    buf = jnp.zeros((rows_p, f_p + _LANE), jnp.bfloat16)
    buf = buf.at[:r, :f].set(h.astype(jnp.bfloat16))
    return buf.at[:, f_p].set(1.0)


# --------------------------------------------------------------------------- kernels
def _sage_layer_kernel(a_ref, hagg_ref, hself_ref, ws_ref, wn_ref, b_ref, o_ref, *,
                       f_p, apply_relu):
    """One SAGEConv('mean') layer for a tile of TM destination rows.

    a_ref     : (TM, Nc)          bf16 0/1 row tile of A[dst, src]
    hagg_ref  : (Nc, f_p + 128)   bf16 source features, ones at column f_p
    hself_ref : (TM, f_p)         bf16 this tile's own (destination) features
    ws / wn   : (f_p, Fout)       f32 self / neighbour weights
    b_ref     : (1, Fout)         f32 bias
    """
    # bf16 x bf16 MXU matmul with f32 accumulation: aggregation AND in-degree in one pass.
    agg = jnp.dot(a_ref[...], hagg_ref[...], preferred_element_type=jnp.float32)
    # columns f_p.. of hagg are [1, 0, ..., 0], so this sum is exactly the in-degree
    deg = jnp.sum(agg[:, f_p:], axis=-1, keepdims=True)
    inv = jnp.where(deg > 0.0, 1.0 / deg, 0.0)
    neigh = agg[:, :f_p] * inv                       # mean aggregation (0 if isolated)
    out = (jnp.dot(hself_ref[...].astype(jnp.float32), ws_ref[...],
                   preferred_element_type=jnp.float32)
           + jnp.dot(neigh, wn_ref[...], preferred_element_type=jnp.float32)
           + b_ref[...])
    if apply_relu:
        out = jnp.maximum(out, 0.0)
    o_ref[...] = out.astype(o_ref.dtype)


def _sage_fused_kernel(a_ref, xa_ref, ws1_ref, wn1_ref, b1_ref,
                       ws2_ref, wn2_ref, b2_ref, o_ref, *, f_in_p):
    """Both SAGE layers in one kernel (small-graph path): A read once, h stays in VMEM."""
    a = a_ref[...]                                   # (N, N) bf16 0/1
    xa = xa_ref[...]                                 # (N, f_in_p + 128) bf16, ones at f_in_p

    # layer 1 aggregation + in-degree in a single bf16 MXU matmul
    agg1 = jnp.dot(a, xa, preferred_element_type=jnp.float32)
    deg = jnp.sum(agg1[:, f_in_p:], axis=-1, keepdims=True)
    inv = jnp.where(deg > 0.0, 1.0 / deg, 0.0)       # shared by both layers
    neigh1 = agg1[:, :f_in_p] * inv
    x = xa[:, :f_in_p].astype(jnp.float32)
    h = (jnp.dot(x, ws1_ref[...], preferred_element_type=jnp.float32)
         + jnp.dot(neigh1, wn1_ref[...], preferred_element_type=jnp.float32)
         + b1_ref[...])
    h = jnp.maximum(h, 0.0)

    # layer 2 (no ReLU); aggregation in bf16, self path keeps f32 h
    neigh2 = jnp.dot(a, h.astype(jnp.bfloat16),
                     preferred_element_type=jnp.float32) * inv
    out = (jnp.dot(h, ws2_ref[...], preferred_element_type=jnp.float32)
           + jnp.dot(neigh2, wn2_ref[...], preferred_element_type=jnp.float32)
           + b2_ref[...])
    o_ref[...] = out.astype(o_ref.dtype)


# --------------------------------------------------------------------------- wrappers
def _sage_fused_call(a_p, x_aug, ws1, wn1, b1, ws2, wn2, b2, *, f_in_p, vmem_cap):
    n_p = a_p.shape[0]
    hid_p = ws1.shape[1]
    f_out_p = ws2.shape[1]
    kernel = functools.partial(_sage_fused_kernel, f_in_p=f_in_p)
    return pl.pallas_call(
        kernel,
        out_shape=jax.ShapeDtypeStruct((n_p, f_out_p), jnp.float32),
        in_specs=[
            pl.BlockSpec((n_p, n_p), lambda: (0, 0)),
            pl.BlockSpec((n_p, f_in_p + _LANE), lambda: (0, 0)),
            pl.BlockSpec((f_in_p, hid_p), lambda: (0, 0)),
            pl.BlockSpec((f_in_p, hid_p), lambda: (0, 0)),
            pl.BlockSpec((1, hid_p), lambda: (0, 0)),
            pl.BlockSpec((hid_p, f_out_p), lambda: (0, 0)),
            pl.BlockSpec((hid_p, f_out_p), lambda: (0, 0)),
            pl.BlockSpec((1, f_out_p), lambda: (0, 0)),
        ],
        out_specs=pl.BlockSpec((n_p, f_out_p), lambda: (0, 0)),
        compiler_params=pltpu.CompilerParams(vmem_limit_bytes=_vmem_limit(vmem_cap)),
    )(a_p, x_aug, ws1, wn1, b1, ws2, wn2, b2)


def _sage_layer_call(a_p, h_aug, ws, wn, b, *, tm, n_c, f_p, out_dtype, apply_relu,
                     vmem_cap, single_buffer_consts):
    n_r = a_p.shape[0]
    f_out_p = ws.shape[1]
    kernel = functools.partial(_sage_layer_kernel, f_p=f_p, apply_relu=apply_relu)

    def const_spec(shape):
        # constant-index blocks: single-buffer to halve their resident VMEM footprint
        if single_buffer_consts:
            return pl.BlockSpec(shape, lambda i: (0, 0), pipeline_mode=pl.Buffered(1))
        return pl.BlockSpec(shape, lambda i: (0, 0))

    return pl.pallas_call(
        kernel,
        out_shape=jax.ShapeDtypeStruct((n_r, f_out_p), out_dtype),
        grid=(n_r // tm,),
        in_specs=[
            pl.BlockSpec((tm, n_c), lambda i: (i, 0)),      # streamed bf16 A row tile
            const_spec((n_c, f_p + _LANE)),                 # all source features (+ones col)
            pl.BlockSpec((tm, f_p), lambda i: (i, 0)),      # this tile's self features
            const_spec((f_p, f_out_p)),                     # W_self
            const_spec((f_p, f_out_p)),                     # W_neigh
            const_spec((1, f_out_p)),                       # bias
        ],
        out_specs=pl.BlockSpec((tm, f_out_p), lambda i: (i, 0)),
        compiler_params=pltpu.CompilerParams(
            dimension_semantics=("parallel",),
            vmem_limit_bytes=_vmem_limit(vmem_cap)),
    )(a_p, h_aug, h_aug, ws, wn, b)


def _pick_tm(n, n_c, f_in_p, hid_p, f_out_p, vmem_cap):
    """Largest TM whose per-step footprint fits comfortably in this chip's VMEM."""
    f_max = max(f_in_p, hid_p)
    o_max = max(hid_p, f_out_p)
    budget = int(0.6 * vmem_cap)

    def step_bytes(tm):
        return (2 * tm * n_c * 2                      # bf16 A tile, double-buffered
                + n_c * (f_max + _LANE) * 2           # resident bf16 source features (+ones)
                + 2 * tm * f_max * 2                  # bf16 self-feature tiles
                + tm * (f_max + _LANE) * 4            # f32 aggregation result
                + 3 * tm * f_max * 4                  # f32 neigh / self temporaries
                + 2 * tm * o_max * 4                  # output tiles + f32 temp
                + (2 * f_max * o_max + o_max) * 4)    # weights + bias

    tm_max = 128
    for cand in (1024, 512, 256, 128):
        if step_bytes(cand) <= budget:
            tm_max = cand
            break
    # choose the tile so row padding never exceeds one 128-block per grid step
    n128 = _round_up(n, _LANE)
    g = max(1, -(-n128 // tm_max))                    # number of row tiles
    return _LANE * (-(-n128 // (_LANE * g)))          # smallest 128-multiple with g*tm >= n128


def sage_forward(adj, x, params, *, path=None):
    """2-layer GraphSAGE('mean') forward.  `adj` is a dense 0/1 A[dst, src]."""
    n, in_feats = x.shape
    hid = params["w_self1"].shape[1]
    out_feats = params["w_self2"].shape[1]

    f_in_p = _round_up(in_feats, _LANE)
    hid_p = _round_up(hid, _LANE)
    f_out_p = _round_up(out_feats, _LANE)

    # weights kept f32 for precision (their K dims are tiny; the aggregation matmul is
    # the one that matters and it runs in bf16)
    ws1 = _pad2d(params["w_self1"], f_in_p, hid_p)
    wn1 = _pad2d(params["w_neigh1"], f_in_p, hid_p)
    b1 = _pad2d(params["b1"].reshape(1, -1), 1, hid_p)
    ws2 = _pad2d(params["w_self2"], hid_p, f_out_p)
    wn2 = _pad2d(params["w_neigh2"], hid_p, f_out_p)
    b2 = _pad2d(params["b2"].reshape(1, -1), 1, f_out_p)

    vmem_cap = _vmem_capacity()

    # fused-path footprint estimate (A + activations + f32 temporaries + weights)
    n8 = _round_up(n, _SUBLANE)
    fused_bytes = (2 * n8 * n8
                   + 6 * n8 * (f_in_p + _LANE)
                   + 10 * n8 * hid_p
                   + 8 * n8 * f_out_p
                   + 8 * (f_in_p * hid_p + hid_p * f_out_p))
    if path is None:
        path = "fused" if fused_bytes <= int(0.4 * vmem_cap) else "tiled"

    if path == "fused":
        # small-graph path: both layers in one pallas_call, A read from HBM only once
        n_p = n8
        a_p = _pad2d(adj, n_p, n_p).astype(jnp.bfloat16)   # 0/1 is exact in bf16
        x_aug = _augment(x, n_p, f_in_p)
        out_p = _sage_fused_call(a_p, x_aug, ws1, wn1, b1, ws2, wn2, b2,
                                 f_in_p=f_in_p, vmem_cap=vmem_cap)
        return out_p[:n, :out_feats]

    # tiled path: one pallas_call per layer, parallel row grid, pipelined A tiles.
    # dst rows padded to TM, src columns only to 128 (decoupled padding).
    n_c = _round_up(n, _LANE)
    tm = _pick_tm(n, n_c, f_in_p, hid_p, f_out_p, vmem_cap)
    n_r = _round_up(n, tm)
    a_p = _pad2d(adj, n_r, n_c).astype(jnp.bfloat16)
    x_aug = _augment(x, n_r, f_in_p)

    def run(single_buffer_consts):
        h1 = _sage_layer_call(a_p, x_aug, ws1, wn1, b1,
                              tm=tm, n_c=n_c, f_p=f_in_p,
                              out_dtype=jnp.bfloat16, apply_relu=True,
                              vmem_cap=vmem_cap,
                              single_buffer_consts=single_buffer_consts)
        h1_aug = _augment(h1, n_r, hid_p)               # re-attach the ones column
        return _sage_layer_call(a_p, h1_aug, ws2, wn2, b2,
                                tm=tm, n_c=n_c, f_p=hid_p,
                                out_dtype=jnp.float32, apply_relu=False,
                                vmem_cap=vmem_cap,
                                single_buffer_consts=single_buffer_consts)

    try:
        out_p = run(True)
    except Exception:
        # pipeline_mode=pl.Buffered(1) not supported by this jax/libtpu: fall back to
        # default double-buffering of the constant blocks (correctness unchanged).
        out_p = run(False)
    return out_p[:n, :out_feats]


# --------------------------------------------------------------------------- reference
def _reference_forward(a, x, params):
    def layer(h, ws, wn, b, relu):
        deg = jnp.sum(a, axis=1, keepdims=True)
        inv = jnp.where(deg > 0, 1.0 / deg, 0.0)
        neigh = (a @ h) * inv
        out = h @ ws + neigh @ wn + b
        return jnp.maximum(out, 0.0) if relu else out
    h = layer(x, params["w_self1"], params["w_neigh1"], params["b1"], True)
    return layer(h, params["w_self2"], params["w_neigh2"], params["b2"], False)


def init_params(key, in_feats, hid_feats, out_feats):
    ks = jax.random.split(key, 4)

    def xavier(k, fan_in, fan_out):
        bound = (6.0 / (fan_in + fan_out)) ** 0.5
        return jax.random.uniform(k, (fan_in, fan_out), jnp.float32, -bound, bound)

    return {
        "w_self1": xavier(ks[0], in_feats, hid_feats),
        "w_neigh1": xavier(ks[1], in_feats, hid_feats),
        "b1": jnp.zeros((1, hid_feats), jnp.float32),
        "w_self2": xavier(ks[2], hid_feats, out_feats),
        "w_neigh2": xavier(ks[3], hid_feats, out_feats),
        "b2": jnp.zeros((1, out_feats), jnp.float32),
    }


if __name__ == "__main__":
    key = jax.random.PRNGKey(0)
    k_adj, k_feat, k_param, k_adj2, k_feat2, k_param2 = jax.random.split(key, 6)

    # ---- small graph (exercises the fused single-kernel path)
    n_nodes, in_feats, hid_feats, out_feats = 16, 8, 32, 4
    adj = (jax.random.uniform(k_adj, (n_nodes, n_nodes)) < 0.3).astype(jnp.float32)
    adj = adj * (1.0 - jnp.eye(n_nodes, dtype=jnp.float32))       # no self-loops
    x = jax.random.normal(k_feat, (n_nodes, in_feats), jnp.float32)
    params = init_params(k_param, in_feats, hid_feats, out_feats)

    out = jax.block_until_ready(sage_forward(adj, x, params))
    ref = _reference_forward(adj, x, params)
    assert out.shape == (n_nodes, out_feats)
    # bf16 activations vs. f32 reference -> loose elementwise tolerance
    assert jnp.allclose(out, ref, atol=5e-2, rtol=5e-2), \
        float(jnp.max(jnp.abs(out - ref)))

    # ---- larger graph (exercises the row-tiled, pipelined per-layer path)
    n2, in2, hid2, out2 = 384, 24, 48, 10
    adj2 = (jax.random.uniform(k_adj2, (n2, n2)) < 0.05).astype(jnp.float32)
    adj2 = adj2 * (1.0 - jnp.eye(n2, dtype=jnp.float32))
    x2 = jax.random.normal(k_feat2, (n2, in2), jnp.float32)
    params2 = init_params(k_param2, in2, hid2, out2)

    out2_v = jax.block_until_ready(sage_forward(adj2, x2, params2, path="tiled"))
    ref2 = _reference_forward(adj2, x2, params2)
    assert out2_v.shape == (n2, out2)
    assert jnp.allclose(out2_v, ref2, atol=5e-2, rtol=5e-2), \
        float(jnp.max(jnp.abs(out2_v - ref2)))
    rel = float(jnp.linalg.norm(out2_v - ref2) / jnp.linalg.norm(ref2))
    assert rel < 1e-2, rel

    print("KERNEL_OK")
</pallas_src>

<mosaic_0001>
module attributes {stable_mosaic.version = 11 : i64} {
  func.func @_sage_fused_kernel(%arg0: memref<16x16xbf16, #tpu.memory_space<vmem>>, %arg1: memref<16x256xbf16, #tpu.memory_space<vmem>>, %arg2: memref<128x128xf32, #tpu.memory_space<vmem>>, %arg3: memref<128x128xf32, #tpu.memory_space<vmem>>, %arg4: memref<1x128xf32, #tpu.memory_space<vmem>>, %arg5: memref<128x128xf32, #tpu.memory_space<vmem>>, %arg6: memref<128x128xf32, #tpu.memory_space<vmem>>, %arg7: memref<1x128xf32, #tpu.memory_space<vmem>>, %arg8: memref<16x128xf32, #tpu.memory_space<vmem>>) attributes {dimension_semantics = [], scalar_prefetch = 0 : i64, scratch_operands = 0 : i64, tpu.core_type = #tpu.core_type<tc>} {
    %c0 = arith.constant 0 : index
    %c0_0 = arith.constant 0 : index
    %0 = vector.load %arg0[%c0, %c0_0] : memref<16x16xbf16, #tpu.memory_space<vmem>>, vector<16x16xbf16>
    %c0_1 = arith.constant 0 : index
    %c0_2 = arith.constant 0 : index
    %1 = vector.load %arg1[%c0_1, %c0_2] : memref<16x256xbf16, #tpu.memory_space<vmem>>, vector<16x256xbf16>
    %cst = arith.constant dense<0.000000e+00> : vector<16x256xf32>
    %2 = tpu.matmul %0, %1, %cst {dimension_numbers = #tpu.dot_dimension_numbers<[1], [0], [0], [1], [0, 0, 1, 1], [], []>} : vector<16x16xbf16>, vector<16x256xbf16>, vector<16x256xf32> -> vector<16x256xf32>
    %3 = vector.extract_strided_slice %2 {offsets = [0, 128], sizes = [16, 128], strides = [1, 1]} : vector<16x256xf32> to vector<16x128xf32>
    %cst_3 = arith.constant dense<0.000000e+00> : vector<16xf32>
    %4 = vector.multi_reduction <add>, %3, %cst_3 [1] : vector<16x128xf32> to vector<16xf32>
    %5 = vector.shape_cast %4 : vector<16xf32> to vector<16x1xf32>
    %cst_4 = arith.constant 0.000000e+00 : f32
    %6 = vector.broadcast %cst_4 : f32 to vector<16x1xf32>
    %7 = arith.cmpf ogt, %5, %6 : vector<16x1xf32>
    %cst_5 = arith.constant 1.000000e+00 : f32
    %8 = vector.broadcast %cst_5 : f32 to vector<16x1xf32>
    %9 = arith.divf %8, %5 : vector<16x1xf32>
    %cst_6 = arith.constant 0.000000e+00 : f32
    %10 = vector.broadcast %cst_6 : f32 to vector<16x1xf32>
    %11 = arith.select %7, %9, %10 : vector<16x1xi1>, vector<16x1xf32>
    %12 = vector.extract_strided_slice %2 {offsets = [0, 0], sizes = [16, 128], strides = [1, 1]} : vector<16x256xf32> to vector<16x128xf32>
    %13 = vector.broadcast %11 : vector<16x1xf32> to vector<16x128xf32>
    %14 = arith.mulf %12, %13 : vector<16x128xf32>
    %15 = vector.extract_strided_slice %1 {offsets = [0, 0], sizes = [16, 128], strides = [1, 1]} : vector<16x256xbf16> to vector<16x128xbf16>
    %16 = arith.extf %15 : vector<16x128xbf16> to vector<16x128xf32>
    %c0_7 = arith.constant 0 : index
    %c0_8 = arith.constant 0 : index
    %17 = vector.load %arg2[%c0_7, %c0_8] : memref<128x128xf32, #tpu.memory_space<vmem>>, vector<128x128xf32>
    %cst_9 = arith.constant dense<0.000000e+00> : vector<16x128xf32>
    %18 = tpu.matmul %16, %17, %cst_9 {dimension_numbers = #tpu.dot_dimension_numbers<[1], [0], [0], [1], [0, 0, 1, 1], [], []>} : vector<16x128xf32>, vector<128x128xf32>, vector<16x128xf32> -> vector<16x128xf32>
    %c0_10 = arith.constant 0 : index
    %c0_11 = arith.constant 0 : index
    %19 = vector.load %arg3[%c0_10, %c0_11] : memref<128x128xf32, #tpu.memory_space<vmem>>, vector<128x128xf32>
    %cst_12 = arith.constant dense<0.000000e+00> : vector<16x128xf32>
    %20 = tpu.matmul %14, %19, %cst_12 {dimension_numbers = #tpu.dot_dimension_numbers<[1], [0], [0], [1], [0, 0, 1, 1], [], []>} : vector<16x128xf32>, vector<128x128xf32>, vector<16x128xf32> -> vector<16x128xf32>
    %21 = arith.addf %18, %20 : vector<16x128xf32>
    %c0_13 = arith.constant 0 : index
    %c0_14 = arith.constant 0 : index
    %22 = vector.load %arg4[%c0_13, %c0_14] : memref<1x128xf32, #tpu.memory_space<vmem>>, vector<1x128xf32>
    %23 = vector.broadcast %22 : vector<1x128xf32> to vector<16x128xf32>
    %24 = arith.addf %21, %23 : vector<16x128xf32>
    %cst_15 = arith.constant 0.000000e+00 : f32
    %25 = vector.broadcast %cst_15 : f32 to vector<16x128xf32>
    %26 = arith.maximumf %24, %25 : vector<16x128xf32>
    %27 = arith.truncf %26 : vector<16x128xf32> to vector<16x128xbf16>
    %cst_16 = arith.constant dense<0.000000e+00> : vector<16x128xf32>
    %28 = tpu.matmul %0, %27, %cst_16 {dimension_numbers = #tpu.dot_dimension_numbers<[1], [0], [0], [1], [0, 0, 1, 1], [], []>} : vector<16x16xbf16>, vector<16x128xbf16>, vector<16x128xf32> -> vector<16x128xf32>
    %29 = vector.broadcast %11 : vector<16x1xf32> to vector<16x128xf32>
    %30 = arith.mulf %28, %29 : vector<16x128xf32>
    %c0_17 = arith.constant 0 : index
    %c0_18 = arith.constant 0 : index
    %31 = vector.load %arg5[%c0_17, %c0_18] : memref<128x128xf32, #tpu.memory_space<vmem>>, vector<128x128xf32>
    %cst_19 = arith.constant dense<0.000000e+00> : vector<16x128xf32>
    %32 = tpu.matmul %26, %31, %cst_19 {dimension_numbers = #tpu.dot_dimension_numbers<[1], [0], [0], [1], [0, 0, 1, 1], [], []>} : vector<16x128xf32>, vector<128x128xf32>, vector<16x128xf32> -> vector<16x128xf32>
    %c0_20 = arith.constant 0 : index
    %c0_21 = arith.constant 0 : index
    %33 = vector.load %arg6[%c0_20, %c0_21] : memref<128x128xf32, #tpu.memory_space<vmem>>, vector<128x128xf32>
    %cst_22 = arith.constant dense<0.000000e+00> : vector<16x128xf32>
    %34 = tpu.matmul %30, %33, %cst_22 {dimension_numbers = #tpu.dot_dimension_numbers<[1], [0], [0], [1], [0, 0, 1, 1], [], []>} : vector<16x128xf32>, vector<128x128xf32>, vector<16x128xf32> -> vector<16x128xf32>
    %35 = arith.addf %32, %34 : vector<16x128xf32>
    %c0_23 = arith.constant 0 : index
    %c0_24 = arith.constant 0 : index
    %36 = vector.load %arg7[%c0_23, %c0_24] : memref<1x128xf32, #tpu.memory_space<vmem>>, vector<1x128xf32>
    %37 = vector.broadcast %36 : vector<1x128xf32> to vector<16x128xf32>
    %38 = arith.addf %35, %37 : vector<16x128xf32>
    %c0_25 = arith.constant 0 : index
    %c0_26 = arith.constant 0 : index
    %39 = vector.load %arg8[%c0_25, %c0_26] : memref<16x128xf32, #tpu.memory_space<vmem>>, vector<16x128xf32>
    tpu.vector_store %arg8[%c0_25, %c0_26], %38 {strides = array<i32>} : memref<16x128xf32, #tpu.memory_space<vmem>>, vector<16x128xf32>,
    return
  }
}

</mosaic_0001>

<llo_original>
// kernel: tpu_custom_call.1
$region0: #{tpu_custom_call.1}
  #allocation0 [shape = 'u32[]', space=smem, size = 0x4, offset = 0x4, fixed_abs, tag = 'smem constant byte address 0x4 - core index']
  #allocation1 [shape = 'u32[144,128]{1,0:T(1,128)}', space=vmem, size = 0x12000, scoped, tag = 'internal scratch']
  %s0 = inlined_call_operand.hbm [shape: bf16[16,16], index: 0, kind: input, shape index: {}]
  %s1 = inlined_call_operand.hbm [shape: bf16[16,256], index: 1, kind: input, shape index: {}]
  %s2 = inlined_call_operand.hbm [shape: f32[128,128], index: 2, kind: input, shape index: {}]
  %s3 = inlined_call_operand.hbm [shape: f32[128,128], index: 3, kind: input, shape index: {}]
  %s4 = inlined_call_operand.vmem [shape: f32[1,128], index: 4, kind: input, shape index: {}]
  %s5 = inlined_call_operand.hbm [shape: f32[128,128], index: 5, kind: input, shape index: {}]
  %s6 = inlined_call_operand.hbm [shape: f32[128,128], index: 6, kind: input, shape index: {}]
  %s7 = inlined_call_operand.vmem [shape: f32[1,128], index: 7, kind: input, shape index: {}]
  %s8 = inlined_call_operand.hbm [shape: f32[16,128], index: 8, kind: output, shape index: {}]
  %s9 = sld [smem:[#allocation0]]
  $region66: #{tpu_custom_call.1} parent=0
    _
  %s11 = ssub.s32 1, %s9
  %s12 = scalar_select 0, %s11, %s9
  $region1: #{tpu_custom_call.1} parent=0
    #allocation2 [shape = 'u8[4096]{0}', space=vmem, size = 0x1000, scoped, tag = 'input window, operand 0, single buffered']
    #allocation3 [shape = 's32[1]{0}', space=sflag, size = 0x4, scoped, tag = 'scoped memory for tpu_custom_call.1']
    #allocation4 [shape = 's32[1]{0}', space=sflag, size = 0x4, scoped, tag = 'scoped memory for tpu_custom_call.1']
    #allocation5 [shape = 'u8[8192]{0}', space=vmem, size = 0x2000, scoped, tag = 'input window, operand 1, single buffered']
    #allocation6 [shape = 's32[1]{0}', space=sflag, size = 0x4, scoped, tag = 'scoped memory for tpu_custom_call.1']
    #allocation7 [shape = 'u8[65536]{0}', space=vmem, size = 0x10000, scoped, tag = 'input window, operand 2, single buffered']
    #allocation8 [shape = 'u8[65536]{0}', space=vmem, size = 0x10000, scoped, tag = 'input window, operand 3, single buffered']
    #allocation9 [shape = 's32[1]{0}', space=sflag, size = 0x4, scoped, tag = 'scoped memory for tpu_custom_call.1']
    #allocation10 [shape = 'u8[65536]{0}', space=vmem, size = 0x10000, scoped, tag = 'input window, operand 5, single buffered']
    #allocation11 [shape = 'u8[65536]{0}', space=vmem, size = 0x10000, scoped, tag = 'input window, operand 6, single buffered']
    #allocation12 [shape = 's32[1]{0}', space=sflag, size = 0x4, scoped, tag = 'scoped memory for tpu_custom_call.1']
    #allocation13 [shape = 'u8[8192]{0}', space=vmem, size = 0x2000, scoped, tag = 'output window, operand 0, single buffered']
    %13 = vsyncpa [#allocation3], 0
    %14 = vsyncpa [#allocation6], 0
    %15 = vsyncpa [#allocation9], 0
    %16 = vsyncpa [#allocation12], 0
    %17 = vsyncpa [#allocation4], 0
    // Predicated region
    $region2: #{tpu_custom_call.1} parent=1 // pred_check
      _
    $region3: #{tpu_custom_call.1} parent=1 // pred_check_branch
      %19 = sbr.rel (0) target = $region5
    $region4: #{tpu_custom_call.1} parent=1 // pred_region
      %s21 = ssub.s32 128, 128
      %22 = vsyncadd [#allocation3], %s21
      %s23 = sshll.u32 [#allocation2], 4
      %s24 = int_to_ptr.vmem [resolvable:$true] %s23
      %29 = dma.hbm_to_vmem [thread:$0]  %s0, 128, %s24, [#allocation3], 64, 64, 4
    $region5: #{tpu_custom_call.1} parent=1 // pred_fallthru
      _
    // Predicated region
    $region6: #{tpu_custom_call.1} parent=1 // pred_check
      _
    $region7: #{tpu_custom_call.1} parent=1 // pred_check_branch
      %31 = sbr.rel (0) target = $region9
    $region8: #{tpu_custom_call.1} parent=1 // pred_region
      %s33 = ssub.s32 256, 256
      %34 = vsyncadd [#allocation6], %s33
      %s35 = sshll.u32 [#allocation5], 4
      %s36 = int_to_ptr.vmem [resolvable:$true] %s35
      %41 = dma.hbm_to_vmem [thread:$0]  %s1, 256, %s36, [#allocation6], 128, 128, 8
    $region9: #{tpu_custom_call.1} parent=1 // pred_fallthru
      _
    // Predicated region
    $region10: #{tpu_custom_call.1} parent=1 // pred_check
      _
    $region11: #{tpu_custom_call.1} parent=1 // pred_check_branch
      %43 = sbr.rel (0) target = $region13
    $region12: #{tpu_custom_call.1} parent=1 // pred_region
      %s45 = ssub.s32 2048, 2048
      %46 = vsyncadd [#allocation6], %s45
      %s47 = sshll.u32 [#allocation7], 4
      %s48 = int_to_ptr.vmem [resolvable:$true] %s47
      %53 = dma.hbm_to_vmem [thread:$0]  %s2, 2048, %s48, [#allocation6], 128, 128, 8
    $region13: #{tpu_custom_call.1} parent=1 // pred_fallthru
      _
    // Predicated region
    $region14: #{tpu_custom_call.1} parent=1 // pred_check
      _
    $region15: #{tpu_custom_call.1} parent=1 // pred_check_branch
      %55 = sbr.rel (0) target = $region17
    $region16: #{tpu_custom_call.1} parent=1 // pred_region
      %s57 = ssub.s32 2048, 2048
      %58 = vsyncadd [#allocation9], %s57
      %s59 = sshll.u32 [#allocation8], 4
      %s60 = int_to_ptr.vmem [resolvable:$true] %s59
      %65 = dma.hbm_to_vmem [thread:$0]  %s3, 2048, %s60, [#allocation9], 128, 128, 8
    $region17: #{tpu_custom_call.1} parent=1 // pred_fallthru
      _
    // Predicated region
    $region18: #{tpu_custom_call.1} parent=1 // pred_check
      _
    $region19: #{tpu_custom_call.1} parent=1 // pred_check_branch
      %67 = sbr.rel (0) target = $region21
    $region20: #{tpu_custom_call.1} parent=1 // pred_region
      _
    $region21: #{tpu_custom_call.1} parent=1 // pred_fallthru
      _
    // Predicated region
    $region22: #{tpu_custom_call.1} parent=1 // pred_check
      _
    $region23: #{tpu_custom_call.1} parent=1 // pred_check_branch
      %69 = sbr.rel (0) target = $region25
    $region24: #{tpu_custom_call.1} parent=1 // pred_region
      %s71 = ssub.s32 2048, 2048
      %72 = vsyncadd [#allocation9], %s71
      %s73 = sshll.u32 [#allocation10], 4
      %s74 = int_to_ptr.vmem [resolvable:$true] %s73
      %79 = dma.hbm_to_vmem [thread:$0]  %s5, 2048, %s74, [#allocation9], 128, 128, 8
    $region25: #{tpu_custom_call.1} parent=1 // pred_fallthru
      _
    // Predicated region
    $region26: #{tpu_custom_call.1} parent=1 // pred_check
      _
    $region27: #{tpu_custom_call.1} parent=1 // pred_check_branch
      %81 = sbr.rel (0) target = $region29
    $region28: #{tpu_custom_call.1} parent=1 // pred_region
      %s83 = ssub.s32 2048, 2048
      %84 = vsyncadd [#allocation12], %s83
      %s85 = sshll.u32 [#allocation11], 4
      %s86 = int_to_ptr.vmem [resolvable:$true] %s85
      %91 = dma.hbm_to_vmem [thread:$0]  %s6, 2048, %s86, [#allocation12], 128, 128, 8
    $region29: #{tpu_custom_call.1} parent=1 // pred_fallthru
      _
    // Predicated region
    $region30: #{tpu_custom_call.1} parent=1 // pred_check
      _
    $region31: #{tpu_custom_call.1} parent=1 // pred_check_branch
      %93 = sbr.rel (0) target = $region33
    $region32: #{tpu_custom_call.1} parent=1 // pred_region
      _
    $region33: #{tpu_custom_call.1} parent=1 // pred_fallthru
      _
    // Predicated region
    $region34: #{tpu_custom_call.1} parent=1 // pred_check
      _
    $region35: #{tpu_custom_call.1} parent=1 // pred_check_branch
      %95 = sbr.rel (0) target = $region37
    $region36: #{tpu_custom_call.1} parent=1 // pred_region
      %96 = dma.done [#allocation3], 128
    $region37: #{tpu_custom_call.1} parent=1 // pred_fallthru
      _
    // Predicated region
    $region38: #{tpu_custom_call.1} parent=1 // pred_check
      _
    $region39: #{tpu_custom_call.1} parent=1 // pred_check_branch
      %98 = sbr.rel (0) target = $region41
    $region40: #{tpu_custom_call.1} parent=1 // pred_region
      %99 = dma.done [#allocation6], 256
    $region41: #{tpu_custom_call.1} parent=1 // pred_fallthru
      _
    // Predicated region
    $region42: #{tpu_custom_call.1} parent=1 // pred_check
      _
    $region43: #{tpu_custom_call.1} parent=1 // pred_check_branch
      %101 = sbr.rel (0) target = $region45
    $region44: #{tpu_custom_call.1} parent=1 // pred_region
      %102 = dma.done [#allocation6], 2048
    $region45: #{tpu_custom_call.1} parent=1 // pred_fallthru
      _
    // Predicated region
    $region46: #{tpu_custom_call.1} parent=1 // pred_check
      _
    $region47: #{tpu_custom_call.1} parent=1 // pred_check_branch
      %104 = sbr.rel (0) target = $region49
    $region48: #{tpu_custom_call.1} parent=1 // pred_region
      %105 = dma.done [#allocation9], 2048
    $region49: #{tpu_custom_call.1} parent=1 // pred_fallthru
      _
    // Predicated region
    $region50: #{tpu_custom_call.1} parent=1 // pred_check
      _
    $region51: #{tpu_custom_call.1} parent=1 // pred_check_branch
      %107 = sbr.rel (0) target = $region53
    $region52: #{tpu_custom_call.1} parent=1 // pred_region
      %108 = dma.done [#allocation9], 2048
    $region53: #{tpu_custom_call.1} parent=1 // pred_fallthru
      _
    // Predicated region
    $region54: #{tpu_custom_call.1} parent=1 // pred_check
      _
    $region55: #{tpu_custom_call.1} parent=1 // pred_check_branch
      %110 = sbr.rel (0) target = $region57
    $region56: #{tpu_custom_call.1} parent=1 // pred_region
      %111 = dma.done [#allocation12], 2048
    $region57: #{tpu_custom_call.1} parent=1 // pred_fallthru
      _
    %v113 = vld [vmem:[#allocation2] sm:$0xf]
    %v114 = vld [vmem:[#allocation2 + $0x4] sm:$0xf]
    %v115 = vld [vmem:[#allocation5] sm:$0xff]
    %v116 = vld [vmem:[#allocation5 + $0x8] sm:$0xff]
    %v119 = vunpack.c.l.b16 %v113
    %v120 = vunpack.c.l.b16 %v114
    %v121 = vpack.c.b16 %v120, %v119
    %v124 = vunpack.c.l.b16 %v115
    %v125 = vunpack.c.h.b16 %v115
    %v126 = vunpack.c.l.b16 %v116
    %v127 = vunpack.c.h.b16 %v116
    %v128 = vpack.c.b16 %v126, %v124
    %v129 = vpack.c.b16 %v127, %v125
    %vm132 = vcmask 130048
    %v134 = vsel %vm132, %v121, 0
    %136 = vmatprep.subr.bf16.mxu0 %v129
    %137 = vmatpush1.bf16.msra.mxu0 %v128
    %138 = vmatprep.subr.bf16.mxu0 0
    %139 = vmatpush1.bf16.msra.mxu0 0
    %140 = vmatprep.subr.bf16.mxu0 0
    %141 = vmatpush1.bf16.msra.mxu0 0
    %142 = vmatprep.subr.bf16.mxu0 0
    %143 = vmatpush1.bf16.msra.mxu0 0
    %144 = vmatprep.subr.bf16.mxu0 0
    %145 = vmatpush1.bf16.msra.mxu0 0
    %146 = vmatprep.subr.bf16.mxu0 0
    %147 = vmatpush1.bf16.msra.mxu0 0
    %148 = vmatprep.subr.bf16.mxu0 0
    %149 = vmatpush1.bf16.msra.mxu0 0
    %150 = vmatprep.subr.bf16.mxu0 0
    %151 = vmatpush1.bf16.msra.mxu0 0
    %152 = vmatprep.subr.bf16.mxu0 0
    %153 = vmatpush1.bf16.msra.mxu0 0
    %154 = vmatprep.subr.bf16.mxu0 0
    %155 = vmatpush1.bf16.msra.mxu0 0
    %156 = vmatprep.subr.bf16.mxu0 0
    %157 = vmatpush1.bf16.msra.mxu0 0
    %158 = vmatprep.subr.bf16.mxu0 0
    %159 = vmatpush1.bf16.msra.mxu0 0
    %160 = vmatprep.subr.bf16.mxu0 0
    %161 = vmatpush1.bf16.msra.mxu0 0
    %162 = vmatprep.subr.bf16.mxu0 0
    %163 = vmatpush1.bf16.msra.mxu0 0
    %164 = vmatprep.subr.bf16.mxu0 0
    %165 = vmatpush1.bf16.msra.mxu0 0
    %166 = vmatprep.subr.bf16.mxu0 0
    %167 = vmatpush1.bf16.msra.mxu0 0
    %168 = vmatprep.mubr.bf16.mxu0 0
    %169 = vmatmul.mubr.bf16.gmra.mrb[0].mxu0 %v134
    %v170 = vpop.f32.mrb[0].mxu0
    %v171 = vadd.f32 0.0, %v170
    %v172 = vpop.f32.mrb[0].mxu0
    %v173 = vadd.f32 0.0, %v172
    %v174 = vpop.f32.mrb[0].mxu0
    %v175 = vadd.f32 0.0, %v174
    %v176 = vpop.f32.mrb[0].mxu0
    %v177 = vadd.f32 0.0, %v176
    %178 = vdwg.mxu0
    %179 = vadd.xlane.f32.xlu0 %v173
    %v180 = vpop.xlane.xlu0 %179
    %181 = vadd.xlane.f32.xlu0 %v177
    %v182 = vpop.xlane.xlu0 %181
    %vm183 = vcmp.gt.f32.partialorder %v180, 0.0
    %vm184 = vcmp.gt.f32.partialorder %v182, 0.0
    %v185 = vrcp.pop %v180
    %v186 = vmul.f32 1.0, %v185
    %v187 = vrcp.pop %v182
    %v188 = vmul.f32 1.0, %v187
    %v189 = vsel %vm183, %v186, 0.0
    %v190 = vsel %vm184, %v188, 0.0
    %v191 = vmul.f32 %v171, %v189
    %v192 = vmul.f32 %v175, %v190
    %v193 = vunpack.c.l.bf16 %v115
    %v194 = vunpack.c.l.bf16 %v116
    %v195 = vld [vmem:[#allocation7] sm:$0xff]
    %v196 = vld [vmem:[#allocation7 + $0x8] sm:$0xff]
    %v197 = vld [vmem:[#allocation7 + $0x10] sm:$0xff]
    %v198 = vld [vmem:[#allocation7 + $0x18] sm:$0xff]
    %v199 = vld [vmem:[#allocation7 + $0x20] sm:$0xff]
    %v200 = vld [vmem:[#allocation7 + $0x28] sm:$0xff]
    %v201 = vld [vmem:[#allocation7 + $0x30] sm:$0xff]
    %v202 = vld [vmem:[#allocation7 + $0x38] sm:$0xff]
    %v203 = vld [vmem:[#allocation7 + $0x40] sm:$0xff]
    %v204 = vld [vmem:[#allocation7 + $0x48] sm:$0xff]
    %v205 = vld [vmem:[#allocation7 + $0x50] sm:$0xff]
    %v206 = vld [vmem:[#allocation7 + $0x58] sm:$0xff]
    %v207 = vld [vmem:[#allocation7 + $0x60] sm:$0xff]
    %v208 = vld [vmem:[#allocation7 + $0x68] sm:$0xff]
    %v209 = vld [vmem:[#allocation7 + $0x70] sm:$0xff]
    %v210 = vld [vmem:[#allocation7 + $0x78] sm:$0xff]
    %v211 = vld [vmem:[#allocation8] sm:$0xff]
    %v212 = vld [vmem:[#allocation8 + $0x8] sm:$0xff]
    %v213 = vld [vmem:[#allocation8 + $0x10] sm:$0xff]
    %v214 = vld [vmem:[#allocation8 + $0x18] sm:$0xff]
    %v215 = vld [vmem:[#allocation8 + $0x20] sm:$0xff]
    %v216 = vld [vmem:[#allocation8 + $0x28] sm:$0xff]
    %v217 = vld [vmem:[#allocation8 + $0x30] sm:$0xff]
    %v218 = vld [vmem:[#allocation8 + $0x38] sm:$0xff]
    %v219 = vld [vmem:[#allocation8 + $0x40] sm:$0xff]
    %v220 = vld [vmem:[#allocation8 + $0x48] sm:$0xff]
    %v221 = vld [vmem:[#allocation8 + $0x50] sm:$0xff]
    %v222 = vld [vmem:[#allocation8 + $0x58] sm:$0xff]
    %v223 = vld [vmem:[#allocation8 + $0x60] sm:$0xff]
    %v224 = vld [vmem:[#allocation8 + $0x68] sm:$0xff]
    %v225 = vld [vmem:[#allocation8 + $0x70] sm:$0xff]
    %v226 = vld [vmem:[#allocation8 + $0x78] sm:$0xff]
    %227 = vmatprep.subr.mxu0 0.0
    %228 = vmatpush1.msra.mxu0 %v211
    %229 = vmatprep.subr.mxu0 0.0
    %230 = vmatpush1.msra.mxu0 %v212
    %231 = vmatprep.subr.mxu0 0.0
    %232 = vmatpush1.msra.mxu0 %v213
    %233 = vmatprep.subr.mxu0 0.0
    %234 = vmatpush1.msra.mxu0 %v214
    %235 = vmatprep.subr.mxu0 0.0
    %236 = vmatpush1.msra.mxu0 %v215
    %237 = vmatprep.subr.mxu0 0.0
    %238 = vmatpush1.msra.mxu0 %v216
    %239 = vmatprep.subr.mxu0 0.0
    %240 = vmatpush1.msra.mxu0 %v217
    %241 = vmatprep.subr.mxu0 0.0
    %242 = vmatpush1.msra.mxu0 %v218
    %243 = vmatprep.subr.mxu0 0.0
    %244 = vmatpush1.msra.mxu0 %v219
    %245 = vmatprep.subr.mxu0 0.0
    %246 = vmatpush1.msra.mxu0 %v220
    %247 = vmatprep.subr.mxu0 0.0
    %248 = vmatpush1.msra.mxu0 %v221
    %249 = vmatprep.subr.mxu0 0.0
    %250 = vmatpush1.msra.mxu0 %v222
    %251 = vmatprep.subr.mxu0 0.0
    %252 = vmatpush1.msra.mxu0 %v223
    %253 = vmatprep.subr.mxu0 0.0
    %254 = vmatpush1.msra.mxu0 %v224
    %255 = vmatprep.subr.mxu0 0.0
    %256 = vmatpush1.msra.mxu0 %v225
    %257 = vmatprep.subr.mxu0 0.0
    %258 = vmatpush1.msra.mxu0 %v226
    %259 = vmatprep.subr.mxu0 0.0
    %260 = vmatpush1.msra.mxu0 0.0
    %261 = vmatprep.subr.mxu0 0.0
    %262 = vmatpush1.msra.mxu0 0.0
    %263 = vmatprep.subr.mxu0 0.0
    %264 = vmatpush1.msra.mxu0 0.0
    %265 = vmatprep.subr.mxu0 0.0
    %266 = vmatpush1.msra.mxu0 0.0
    %267 = vmatprep.subr.mxu0 0.0
    %268 = vmatpush1.msra.mxu0 0.0
    %269 = vmatprep.subr.mxu0 0.0
    %270 = vmatpush1.msra.mxu0 0.0
    %271 = vmatprep.subr.mxu0 0.0
    %272 = vmatpush1.msra.mxu0 0.0
    %273 = vmatprep.subr.mxu0 0.0
    %274 = vmatpush1.msra.mxu0 0.0
    %275 = vmatprep.subr.mxu0 0.0
    %276 = vmatpush1.msra.mxu0 0.0
    %277 = vmatprep.subr.mxu0 0.0
    %278 = vmatpush1.msra.mxu0 0.0
    %279 = vmatprep.subr.mxu0 0.0
    %280 = vmatpush1.msra.mxu0 0.0
    %281 = vmatprep.subr.mxu0 0.0
    %282 = vmatpush1.msra.mxu0 0.0
    %283 = vmatprep.subr.mxu0 0.0
    %284 = vmatpush1.msra.mxu0 0.0
    %285 = vmatprep.subr.mxu0 0.0
    %286 = vmatpush1.msra.mxu0 0.0
    %287 = vmatprep.subr.mxu0 0.0
    %288 = vmatpush1.msra.mxu0 0.0
    %289 = vmatprep.subr.mxu0 0.0
    %290 = vmatpush1.msra.mxu0 0.0
    %291 = vmatprep.mubr.f32.mxu0 0.0
    %292 = vmatmul.mubr.f32.gmra.mrb[0].mxu0 %v191
    %v293 = vpop.f32.mrb[0].mxu0
    %v294 = vadd.f32 0.0, %v293
    %v295 = vpop.f32.mrb[0].mxu0
    %296 = vmatprep.mubr.f32.mxu0 0.0
    %297 = vmatmul.mubr.f32.gmra.mrb[0].mxu0 %v192
    %v298 = vpop.f32.mrb[0].mxu0
    %v299 = vadd.f32 0.0, %v298
    %v300 = vpop.f32.mrb[0].mxu0
    %301 = vdwg.mxu0
    %302 = vmatprep.subr.mxu0 0.0
    %303 = vmatpush1.msra.mxu0 %v195
    %304 = vmatprep.subr.mxu0 0.0
    %305 = vmatpush1.msra.mxu0 %v196
    %306 = vmatprep.subr.mxu0 0.0
    %307 = vmatpush1.msra.mxu0 %v197
    %308 = vmatprep.subr.mxu0 0.0
    %309 = vmatpush1.msra.mxu0 %v198
    %310 = vmatprep.subr.mxu0 0.0
    %311 = vmatpush1.msra.mxu0 %v199
    %312 = vmatprep.subr.mxu0 0.0
    %313 = vmatpush1.msra.mxu0 %v200
    %314 = vmatprep.subr.mxu0 0.0
    %315 = vmatpush1.msra.mxu0 %v201
    %316 = vmatprep.subr.mxu0 0.0
    %317 = vmatpush1.msra.mxu0 %v202
    %318 = vmatprep.subr.mxu0 0.0
    %319 = vmatpush1.msra.mxu0 %v203
    %320 = vmatprep.subr.mxu0 0.0
    %321 = vmatpush1.msra.mxu0 %v204
    %322 = vmatprep.subr.mxu0 0.0
    %323 = vmatpush1.msra.mxu0 %v205
    %324 = vmatprep.subr.mxu0 0.0
    %325 = vmatpush1.msra.mxu0 %v206
    %326 = vmatprep.subr.mxu0 0.0
    %327 = vmatpush1.msra.mxu0 %v207
    %328 = vmatprep.subr.mxu0 0.0
    %329 = vmatpush1.msra.mxu0 %v208
    %330 = vmatprep.subr.mxu0 0.0
    %331 = vmatpush1.msra.mxu0 %v209
    %332 = vmatprep.subr.mxu0 0.0
    %333 = vmatpush1.msra.mxu0 %v210
    %334 = vmatprep.subr.mxu0 0.0
    %335 = vmatpush1.msra.mxu0 0.0
    %336 = vmatprep.subr.mxu0 0.0
    %337 = vmatpush1.msra.mxu0 0.0
    %338 = vmatprep.subr.mxu0 0.0
    %339 = vmatpush1.msra.mxu0 0.0
    %340 = vmatprep.subr.mxu0 0.0
    %341 = vmatpush1.msra.mxu0 0.0
    %342 = vmatprep.subr.mxu0 0.0
    %343 = vmatpush1.msra.mxu0 0.0
    %344 = vmatprep.subr.mxu0 0.0
    %345 = vmatpush1.msra.mxu0 0.0
    %346 = vmatprep.subr.mxu0 0.0
    %347 = vmatpush1.msra.mxu0 0.0
    %348 = vmatprep.subr.mxu0 0.0
    %349 = vmatpush1.msra.mxu0 0.0
    %350 = vmatprep.subr.mxu0 0.0
    %351 = vmatpush1.msra.mxu0 0.0
    %352 = vmatprep.subr.mxu0 0.0
    %353 = vmatpush1.msra.mxu0 0.0
    %354 = vmatprep.subr.mxu0 0.0
    %355 = vmatpush1.msra.mxu0 0.0
    %356 = vmatprep.subr.mxu0 0.0
    %357 = vmatpush1.msra.mxu0 0.0
    %358 = vmatprep.subr.mxu0 0.0
    %359 = vmatpush1.msra.mxu0 0.0
    %360 = vmatprep.subr.mxu0 0.0
    %361 = vmatpush1.msra.mxu0 0.0
    %362 = vmatprep.subr.mxu0 0.0
    %363 = vmatpush1.msra.mxu0 0.0
    %364 = vmatprep.subr.mxu0 0.0
    %365 = vmatpush1.msra.mxu0 0.0
    %366 = vmatprep.mubr.f32.mxu0 0.0
    %367 = vmatmul.mubr.f32.gmra.mrb[0].mxu0 %v193
    %v368 = vpop.f32.mrb[0].mxu0
    %v369 = vadd.f32 %v294, %v368
    %v370 = vpop.f32.mrb[0].mxu0
    %371 = vmatprep.mubr.f32.mxu0 0.0
    %372 = vmatmul.mubr.f32.gmra.mrb[0].mxu0 %v194
    %v373 = vpop.f32.mrb[0].mxu0
    %v374 = vadd.f32 %v299, %v373
    %v375 = vpop.f32.mrb[0].mxu0
    %376 = vdwg.mxu0
    %v377 = vld [vmem:[%s4] sm:$0x1]
    %v379 = vlaneseq
    %v380 = vshrl.u32 %v379, 7
    %v381 = vsub.s32 0, %v380
    %v382 = vrot.slane %v377, %v381
    %v384 = vadd.f32 %v369, %v382
    %v385 = vadd.f32 %v374, %v382
    %v386 = vmax.f32 %v384, 0.0
    %v387 = vmax.f32 %v385, 0.0
    %v388 = vpack.c.bf16 %v387, %v386
    %389 = vmatprep.subr.bf16.mxu0 0
    %390 = vmatpush1.bf16.msra.mxu0 %v388
    %391 = vmatprep.subr.bf16.mxu0 0
    %392 = vmatpush1.bf16.msra.mxu0 0
    %393 = vmatprep.subr.bf16.mxu0 0
    %394 = vmatpush1.bf16.msra.mxu0 0
    %395 = vmatprep.subr.bf16.mxu0 0
    %396 = vmatpush1.bf16.msra.mxu0 0
    %397 = vmatprep.subr.bf16.mxu0 0
    %398 = vmatpush1.bf16.msra.mxu0 0
    %399 = vmatprep.subr.bf16.mxu0 0
    %400 = vmatpush1.bf16.msra.mxu0 0
    %401 = vmatprep.subr.bf16.mxu0 0
    %402 = vmatpush1.bf16.msra.mxu0 0
    %403 = vmatprep.subr.bf16.mxu0 0
    %404 = vmatpush1.bf16.msra.mxu0 0
    %405 = vmatprep.subr.bf16.mxu0 0
    %406 = vmatpush1.bf16.msra.mxu0 0
    %407 = vmatprep.subr.bf16.mxu0 0
    %408 = vmatpush1.bf16.msra.mxu0 0
    %409 = vmatprep.subr.bf16.mxu0 0
    %410 = vmatpush1.bf16.msra.mxu0 0
    %411 = vmatprep.subr.bf16.mxu0 0
    %412 = vmatpush1.bf16.msra.mxu0 0
    %413 = vmatprep.subr.bf16.mxu0 0
    %414 = vmatpush1.bf16.msra.mxu0 0
    %415 = vmatprep.subr.bf16.mxu0 0
    %416 = vmatpush1.bf16.msra.mxu0 0
    %417 = vmatprep.subr.bf16.mxu0 0
    %418 = vmatpush1.bf16.msra.mxu0 0
    %419 = vmatprep.subr.bf16.mxu0 0
    %420 = vmatpush1.bf16.msra.mxu0 0
    %421 = vmatprep.mubr.bf16.mxu0 0
    %422 = vmatmul.mubr.bf16.gmra.mrb[0].mxu0 %v134
    %v423 = vpop.f32.mrb[0].mxu0
    %v424 = vadd.f32 0.0, %v423
    %v425 = vpop.f32.mrb[0].mxu0
    %v426 = vpop.f32.mrb[0].mxu0
    %v427 = vadd.f32 0.0, %v426
    %v428 = vpop.f32.mrb[0].mxu0
    %429 = vdwg.mxu0
    %v430 = vmul.f32 %v424, %v189
    %v431 = vmul.f32 %v427, %v190
    %v432 = vld [vmem:[#allocation10] sm:$0xff]
    %v433 = vld [vmem:[#allocation10 + $0x8] sm:$0xff]
    %v434 = vld [vmem:[#allocation10 + $0x10] sm:$0xff]
    %v435 = vld [vmem:[#allocation10 + $0x18] sm:$0xff]
    %v436 = vld [vmem:[#allocation10 + $0x20] sm:$0xff]
    %v437 = vld [vmem:[#allocation10 + $0x28] sm:$0xff]
    %v438 = vld [vmem:[#allocation10 + $0x30] sm:$0xff]
    %v439 = vld [vmem:[#allocation10 + $0x38] sm:$0xff]
    %v440 = vld [vmem:[#allocation10 + $0x40] sm:$0xff]
    %v441 = vld [vmem:[#allocation10 + $0x48] sm:$0xff]
    %v442 = vld [vmem:[#allocation10 + $0x50] sm:$0xff]
    %v443 = vld [vmem:[#allocation10 + $0x58] sm:$0xff]
    %v444 = vld [vmem:[#allocation10 + $0x60] sm:$0xff]
    %v445 = vld [vmem:[#allocation10 + $0x68] sm:$0xff]
    %v446 = vld [vmem:[#allocation10 + $0x70] sm:$0xff]
    %v447 = vld [vmem:[#allocation10 + $0x78] sm:$0xff]
    %v448 = vld [vmem:[#allocation11] sm:$0xff]
    %v449 = vld [vmem:[#allocation11 + $0x8] sm:$0xff]
    %v450 = vld [vmem:[#allocation11 + $0x10] sm:$0xff]
    %v451 = vld [vmem:[#allocation11 + $0x18] sm:$0xff]
    %v452 = vld [vmem:[#allocation11 + $0x20] sm:$0xff]
    %v453 = vld [vmem:[#allocation11 + $0x28] sm:$0xff]
    %v454 = vld [vmem:[#allocation11 + $0x30] sm:$0xff]
    %v455 = vld [vmem:[#allocation11 + $0x38] sm:$0xff]
    %v456 = vld [vmem:[#allocation11 + $0x40] sm:$0xff]
    %v457 = vld [vmem:[#allocation11 + $0x48] sm:$0xff]
    %v458 = vld [vmem:[#allocation11 + $0x50] sm:$0xff]
    %v459 = vld [vmem:[#allocation11 + $0x58] sm:$0xff]
    %v460 = vld [vmem:[#allocation11 + $0x60] sm:$0xff]
    %v461 = vld [vmem:[#allocation11 + $0x68] sm:$0xff]
    %v462 = vld [vmem:[#allocation11 + $0x70] sm:$0xff]
    %v463 = vld [vmem:[#allocation11 + $0x78] sm:$0xff]
    %464 = vmatprep.subr.mxu0 0.0
    %465 = vmatpush1.msra.mxu0 %v448
    %466 = vmatprep.subr.mxu0 0.0
    %467 = vmatpush1.msra.mxu0 %v449
    %468 = vmatprep.subr.mxu0 0.0
    %469 = vmatpush1.msra.mxu0 %v450
    %470 = vmatprep.subr.mxu0 0.0
    %471 = vmatpush1.msra.mxu0 %v451
    %472 = vmatprep.subr.mxu0 0.0
    %473 = vmatpush1.msra.mxu0 %v452
    %474 = vmatprep.subr.mxu0 0.0
    %475 = vmatpush1.msra.mxu0 %v453
    %476 = vmatprep.subr.mxu0 0.0
    %477 = vmatpush1.msra.mxu0 %v454
    %478 = vmatprep.subr.mxu0 0.0
    %479 = vmatpush1.msra.mxu0 %v455
    %480 = vmatprep.subr.mxu0 0.0
    %481 = vmatpush1.msra.mxu0 %v456
    %482 = vmatprep.subr.mxu0 0.0
    %483 = vmatpush1.msra.mxu0 %v457
    %484 = vmatprep.subr.mxu0 0.0
    %485 = vmatpush1.msra.mxu0 %v458
    %486 = vmatprep.subr.mxu0 0.0
    %487 = vmatpush1.msra.mxu0 %v459
    %488 = vmatprep.subr.mxu0 0.0
    %489 = vmatpush1.msra.mxu0 %v460
    %490 = vmatprep.subr.mxu0 0.0
    %491 = vmatpush1.msra.mxu0 %v461
    %492 = vmatprep.subr.mxu0 0.0
    %493 = vmatpush1.msra.mxu0 %v462
    %494 = vmatprep.subr.mxu0 0.0
    %495 = vmatpush1.msra.mxu0 %v463
    %496 = vmatprep.subr.mxu0 0.0
    %497 = vmatpush1.msra.mxu0 0.0
    %498 = vmatprep.subr.mxu0 0.0
    %499 = vmatpush1.msra.mxu0 0.0
    %500 = vmatprep.subr.mxu0 0.0
    %501 = vmatpush1.msra.mxu0 0.0
    %502 = vmatprep.subr.mxu0 0.0
    %503 = vmatpush1.msra.mxu0 0.0
    %504 = vmatprep.subr.mxu0 0.0
    %505 = vmatpush1.msra.mxu0 0.0
    %506 = vmatprep.subr.mxu0 0.0
    %507 = vmatpush1.msra.mxu0 0.0
    %508 = vmatprep.subr.mxu0 0.0
    %509 = vmatpush1.msra.mxu0 0.0
    %510 = vmatprep.subr.mxu0 0.0
    %511 = vmatpush1.msra.mxu0 0.0
    %512 = vmatprep.subr.mxu0 0.0
    %513 = vmatpush1.msra.mxu0 0.0
    %514 = vmatprep.subr.mxu0 0.0
    %515 = vmatpush1.msra.mxu0 0.0
    %516 = vmatprep.subr.mxu0 0.0
    %517 = vmatpush1.msra.mxu0 0.0
    %518 = vmatprep.subr.mxu0 0.0
    %519 = vmatpush1.msra.mxu0 0.0
    %520 = vmatprep.subr.mxu0 0.0
    %521 = vmatpush1.msra.mxu0 0.0
    %522 = vmatprep.subr.mxu0 0.0
    %523 = vmatpush1.msra.mxu0 0.0
    %524 = vmatprep.subr.mxu0 0.0
    %525 = vmatpush1.msra.mxu0 0.0
    %526 = vmatprep.subr.mxu0 0.0
    %527 = vmatpush1.msra.mxu0 0.0
    %528 = vmatprep.mubr.f32.mxu0 0.0
    %529 = vmatmul.mubr.f32.gmra.mrb[0].mxu0 %v430
    %v530 = vpop.f32.mrb[0].mxu0
    %v531 = vadd.f32 0.0, %v530
    %v532 = vpop.f32.mrb[0].mxu0
    %533 = vmatprep.mubr.f32.mxu0 0.0
    %534 = vmatmul.mubr.f32.gmra.mrb[0].mxu0 %v431
    %v535 = vpop.f32.mrb[0].mxu0
    %v536 = vadd.f32 0.0, %v535
    %v537 = vpop.f32.mrb[0].mxu0
    %538 = vdwg.mxu0
    %539 = vmatprep.subr.mxu0 0.0
    %540 = vmatpush1.msra.mxu0 %v432
    %541 = vmatprep.subr.mxu0 0.0
    %542 = vmatpush1.msra.mxu0 %v433
    %543 = vmatprep.subr.mxu0 0.0
    %544 = vmatpush1.msra.mxu0 %v434
    %545 = vmatprep.subr.mxu0 0.0
    %546 = vmatpush1.msra.mxu0 %v435
    %547 = vmatprep.subr.mxu0 0.0
    %548 = vmatpush1.msra.mxu0 %v436
    %549 = vmatprep.subr.mxu0 0.0
    %550 = vmatpush1.msra.mxu0 %v437
    %551 = vmatprep.subr.mxu0 0.0
    %552 = vmatpush1.msra.mxu0 %v438
    %553 = vmatprep.subr.mxu0 0.0
    %554 = vmatpush1.msra.mxu0 %v439
    %555 = vmatprep.subr.mxu0 0.0
    %556 = vmatpush1.msra.mxu0 %v440
    %557 = vmatprep.subr.mxu0 0.0
    %558 = vmatpush1.msra.mxu0 %v441
    %559 = vmatprep.subr.mxu0 0.0
    %560 = vmatpush1.msra.mxu0 %v442
    %561 = vmatprep.subr.mxu0 0.0
    %562 = vmatpush1.msra.mxu0 %v443
    %563 = vmatprep.subr.mxu0 0.0
    %564 = vmatpush1.msra.mxu0 %v444
    %565 = vmatprep.subr.mxu0 0.0
    %566 = vmatpush1.msra.mxu0 %v445
    %567 = vmatprep.subr.mxu0 0.0
    %568 = vmatpush1.msra.mxu0 %v446
    %569 = vmatprep.subr.mxu0 0.0
    %570 = vmatpush1.msra.mxu0 %v447
    %571 = vmatprep.subr.mxu0 0.0
    %572 = vmatpush1.msra.mxu0 0.0
    %573 = vmatprep.subr.mxu0 0.0
    %574 = vmatpush1.msra.mxu0 0.0
    %575 = vmatprep.subr.mxu0 0.0
    %576 = vmatpush1.msra.mxu0 0.0
    %577 = vmatprep.subr.mxu0 0.0
    %578 = vmatpush1.msra.mxu0 0.0
    %579 = vmatprep.subr.mxu0 0.0
    %580 = vmatpush1.msra.mxu0 0.0
    %581 = vmatprep.subr.mxu0 0.0
    %582 = vmatpush1.msra.mxu0 0.0
    %583 = vmatprep.subr.mxu0 0.0
    %584 = vmatpush1.msra.mxu0 0.0
    %585 = vmatprep.subr.mxu0 0.0
    %586 = vmatpush1.msra.mxu0 0.0
    %587 = vmatprep.subr.mxu0 0.0
    %588 = vmatpush1.msra.mxu0 0.0
    %589 = vmatprep.subr.mxu0 0.0
    %590 = vmatpush1.msra.mxu0 0.0
    %591 = vmatprep.subr.mxu0 0.0
    %592 = vmatpush1.msra.mxu0 0.0
    %593 = vmatprep.subr.mxu0 0.0
    %594 = vmatpush1.msra.mxu0 0.0
    %595 = vmatprep.subr.mxu0 0.0
    %596 = vmatpush1.msra.mxu0 0.0
    %597 = vmatprep.subr.mxu0 0.0
    %598 = vmatpush1.msra.mxu0 0.0
    %599 = vmatprep.subr.mxu0 0.0
    %600 = vmatpush1.msra.mxu0 0.0
    %601 = vmatprep.subr.mxu0 0.0
    %602 = vmatpush1.msra.mxu0 0.0
    %603 = vmatprep.mubr.f32.mxu0 0.0
    %604 = vmatmul.mubr.f32.gmra.mrb[0].mxu0 %v386
    %v605 = vpop.f32.mrb[0].mxu0
    %v606 = vadd.f32 %v531, %v605
    %v607 = vpop.f32.mrb[0].mxu0
    %608 = vmatprep.mubr.f32.mxu0 0.0
    %609 = vmatmul.mubr.f32.gmra.mrb[0].mxu0 %v387
    %v610 = vpop.f32.mrb[0].mxu0
    %v611 = vadd.f32 %v536, %v610
    %v612 = vpop.f32.mrb[0].mxu0
    %613 = vdwg.mxu0
    %v614 = vld [vmem:[%s7] sm:$0x1]
    %v616 = vlaneseq
    %v617 = vshrl.u32 %v616, 7
    %v618 = vsub.s32 0, %v617
    %v619 = vrot.slane %v614, %v618
    %v621 = vadd.f32 %v606, %v619
    %v622 = vadd.f32 %v611, %v619
    %623 = vst [vmem:[#allocation13] sm:$0xff] %v621
    %624 = vst [vmem:[#allocation13 + $0x8] sm:$0xff] %v622
    // Predicated region
    $region58: #{tpu_custom_call.1} parent=1 // pred_check
      _
    $region59: #{tpu_custom_call.1} parent=1 // pred_check_branch
      %626 = sbr.rel (0) target = $region61
    $region60: #{tpu_custom_call.1} parent=1 // pred_region
      %s628 = ssub.s32 256, 256
      %629 = vsyncadd [#allocation4], %s628
      %s630 = sshll.u32 [#allocation13], 4
      %s631 = int_to_ptr.vmem [resolvable:$true] %s630
      %636 = dma.vmem_to_hbm [thread:$0]  %s631, 256, %s8, [#allocation4], 128, 128, 8
    $region61: #{tpu_custom_call.1} parent=1 // pred_fallthru
      _
    // Predicated region
    $region62: #{tpu_custom_call.1} parent=1 // pred_check
      _
    $region63: #{tpu_custom_call.1} parent=1 // pred_check_branch
      %638 = sbr.rel (0) target = $region65
    $region64: #{tpu_custom_call.1} parent=1 // pred_region
      %639 = dma.done [#allocation4], 256
    $region65: #{tpu_custom_call.1} parent=1 // pred_fallthru
      _
    %640 = vsyncpa [#allocation3], 1
    %641 = vsyncpa [#allocation6], 1
    %642 = vsyncpa [#allocation9], 1
    %643 = vsyncpa [#allocation12], 1
    %644 = vsyncpa [#allocation4], 1

</llo_original>
